<compile_context>
chip_gen: v7x
topology: tpu7x:2x2x1
jax: 0.10.0
libtpu: 0.0.40
codegen_flags: <defaults>
</compile_context>

<pallas_src>
import jax
import jax.numpy as jnp
from jax.experimental import pallas as pl
from jax.experimental.pallas import tpu as pltpu

IN_FEATURES = 28 * 28          # 784 (divisible by 16 -> fine for sublane tiling)
HIDDEN = 128
OUT_FEATURES = 10
OUT_PAD = 128                  # lane-dense output width


def _round_up(a: int, m: int) -> int:
    return ((a + m - 1) // m) * m


def _mlp_kernel(x_ref, w1_ref, b1_ref, w2_ref, b2_ref, o_ref):
    # f32 -> bf16 cast in-kernel: free VPU filler under the x DMA bottleneck.
    x = x_ref[...].astype(jnp.bfloat16)
    # fc1: (TB, 784)bf16 @ (784, 128)bf16 -> f32 accumulation on the MXU
    h = jnp.dot(x, w1_ref[...], preferred_element_type=jnp.float32)
    # bias + ReLU in f32 on the VPU
    h = jnp.maximum(h + b1_ref[...], 0.0)
    # fc2: (TB, 128)bf16 @ (128, 128)bf16 -> f32; lane-dense (TB, 128) store
    y = jnp.dot(h.astype(jnp.bfloat16), w2_ref[...],
                preferred_element_type=jnp.float32)
    o_ref[...] = (y + b2_ref[...]).astype(o_ref.dtype)


def prepare_params(w1, b1, w2, b2):
    """One-time parameter prep (hoisted out of the forward path).

    Weights are stored transposed vs. PyTorch, i.e. (in_features, out_features),
    so the kernel computes y = relu(x @ W1 + b1) @ W2 + b2.
    """
    w1_p = w1.astype(jnp.bfloat16)                        # (784, 128)
    b1_p = b1.reshape(1, HIDDEN).astype(jnp.float32)      # (1, 128)
    w2_p = jnp.zeros((HIDDEN, OUT_PAD), jnp.bfloat16)
    w2_p = w2_p.at[:, :OUT_FEATURES].set(w2.astype(jnp.bfloat16))
    b2_p = jnp.zeros((1, OUT_PAD), jnp.float32)
    b2_p = b2_p.at[:, :OUT_FEATURES].set(b2.astype(jnp.float32))
    return w1_p, b1_p, w2_p, b2_p


def _pick_tile(n: int, tb_max: int) -> int:
    """Batch tile: large to amortize per-step overhead, >=2 grid steps for 2 TCs."""
    n128 = _round_up(max(n, 1), 128)
    tb = min(tb_max, n128)
    if n128 > 128 and n128 <= tb:
        # whole batch would fit in one tile -> split in two so megacore can help
        tb = _round_up(pl.cdiv(n128, 2), 128)
    return tb


def simple_nn_forward(x, params, *, tb: int = 1024):
    """x: (N, 1, 28, 28) float32 -> logits (N, 10) float32."""
    w1_p, b1_p, w2_p, b2_p = params
    n = x.shape[0]
    x2d = x.reshape(n, IN_FEATURES)                       # x.view(-1, 784); stays f32

    tb = _pick_tile(n, tb)
    n_pad = _round_up(n, tb)
    if n_pad != n:                                        # only pad when batch % tb != 0
        x2d = jnp.pad(x2d, ((0, n_pad - n), (0, 0)))

    grid = (n_pad // tb,)

    flops = 2 * n_pad * (IN_FEATURES * HIDDEN + HIDDEN * OUT_PAD)
    bytes_accessed = (n_pad * IN_FEATURES * 4            # x reads (f32)
                      + n_pad * OUT_PAD * 4              # logits writes (f32)
                      + IN_FEATURES * HIDDEN * 2         # w1 (bf16, read once)
                      + HIDDEN * OUT_PAD * 2             # w2 (bf16, read once)
                      + (HIDDEN + OUT_PAD) * 4)          # biases

    out = pl.pallas_call(
        _mlp_kernel,
        out_shape=jax.ShapeDtypeStruct((n_pad, OUT_PAD), jnp.float32),
        grid_spec=pltpu.PrefetchScalarGridSpec(
            num_scalar_prefetch=0,
            grid=grid,
            in_specs=[
                pl.BlockSpec((tb, IN_FEATURES), lambda i: (i, 0)),     # x tile (f32)
                pl.BlockSpec((IN_FEATURES, HIDDEN), lambda i: (0, 0)), # w1 (resident)
                pl.BlockSpec((1, HIDDEN), lambda i: (0, 0)),           # b1 (resident)
                pl.BlockSpec((HIDDEN, OUT_PAD), lambda i: (0, 0)),     # w2 (resident)
                pl.BlockSpec((1, OUT_PAD), lambda i: (0, 0)),          # b2 (resident)
            ],
            out_specs=pl.BlockSpec((tb, OUT_PAD), lambda i: (i, 0)),
        ),
        compiler_params=pltpu.CompilerParams(
            dimension_semantics=("parallel",),
        ),
        cost_estimate=pl.CostEstimate(flops=flops, transcendentals=0,
                                      bytes_accessed=bytes_accessed),
    )(x2d, w1_p, b1_p, w2_p, b2_p)

    # un-pad: drop padded batch rows and padded output lanes
    return out[:n, :OUT_FEATURES]


def init_params(key):
    """Deterministic synthetic init matching nn.Linear shapes (stored as (in, out))."""
    k1, k2, k3, k4 = jax.random.split(key, 4)
    in1, h, out = IN_FEATURES, HIDDEN, OUT_FEATURES
    # PyTorch nn.Linear default: U(-1/sqrt(in), 1/sqrt(in))
    s1 = 1.0 / jnp.sqrt(in1)
    s2 = 1.0 / jnp.sqrt(h)
    w1 = jax.random.uniform(k1, (in1, h), jnp.float32, -s1, s1)
    b1 = jax.random.uniform(k2, (h,), jnp.float32, -s1, s1)
    w2 = jax.random.uniform(k3, (h, out), jnp.float32, -s2, s2)
    b2 = jax.random.uniform(k4, (out,), jnp.float32, -s2, s2)
    return w1, b1, w2, b2


if __name__ == "__main__":
    key = jax.random.PRNGKey(0)
    k_x, k_p = jax.random.split(key)

    batch = 8
    x = jax.random.normal(k_x, (batch, 1, 28, 28), jnp.float32)  # NCHW, MNIST-like
    w1, b1, w2, b2 = init_params(k_p)

    params = prepare_params(w1, b1, w2, b2)                      # one-time prep
    logits = simple_nn_forward(x, params)
    jax.block_until_ready(logits)
    assert logits.shape == (batch, OUT_FEATURES)

    # --- reference paths -------------------------------------------------------
    x2d = x.reshape(batch, -1)

    # bf16-consistent reference (same casting as kernel, f32 accumulation)
    h_ref = jnp.maximum(
        jnp.dot(x2d.astype(jnp.bfloat16), w1.astype(jnp.bfloat16),
                preferred_element_type=jnp.float32) + b1, 0.0)
    ref_bf16 = jnp.dot(h_ref.astype(jnp.bfloat16), w2.astype(jnp.bfloat16),
                       preferred_element_type=jnp.float32) + b2
    assert jnp.allclose(logits, ref_bf16, atol=5e-3, rtol=5e-3), \
        float(jnp.max(jnp.abs(logits - ref_bf16)))

    # loose check against full-f32 reference (bf16 matmul inputs => ~1e-2 deviation)
    ref_f32 = jnp.maximum(x2d @ w1 + b1, 0.0) @ w2 + b2
    assert jnp.allclose(logits, ref_f32, atol=5e-2, rtol=5e-2), \
        float(jnp.max(jnp.abs(logits - ref_f32)))

    print("KERNEL_OK")
</pallas_src>

<mosaic_0001>
module attributes {stable_mosaic.version = 11 : i64} {
  func.func @_mlp_kernel(%arg0: i32, %arg1: memref<128x784xf32, #tpu.memory_space<vmem>>, %arg2: memref<784x128xbf16, #tpu.memory_space<vmem>>, %arg3: memref<1x128xf32, #tpu.memory_space<vmem>>, %arg4: memref<128x128xbf16, #tpu.memory_space<vmem>>, %arg5: memref<1x128xf32, #tpu.memory_space<vmem>>, %arg6: memref<128x128xf32, #tpu.memory_space<vmem>>) attributes {dimension_semantics = [#tpu.dimension_semantics<parallel>], iteration_bounds = array<i64: 1>, scalar_prefetch = 0 : i64, scratch_operands = 0 : i64, tpu.core_type = #tpu.core_type<tc>, window_params = [{transform_indices = @transform_0, window_bounds = array<i64: 128, 784>}, {pipeline_mode = #tpu.pipeline_mode<synchronous>, transform_indices = @transform_1, window_bounds = array<i64: 784, 128>}, {pipeline_mode = #tpu.pipeline_mode<synchronous>, transform_indices = @transform_2, window_bounds = array<i64: 1, 128>}, {pipeline_mode = #tpu.pipeline_mode<synchronous>, transform_indices = @transform_3, window_bounds = array<i64: 128, 128>}, {pipeline_mode = #tpu.pipeline_mode<synchronous>, transform_indices = @transform_4, window_bounds = array<i64: 1, 128>}, {transform_indices = @transform_5, window_bounds = array<i64: 128, 128>}]} {
    %c0 = arith.constant 0 : index
    %c0_0 = arith.constant 0 : index
    %0 = vector.load %arg1[%c0, %c0_0] : memref<128x784xf32, #tpu.memory_space<vmem>>, vector<128x784xf32>
    %1 = arith.truncf %0 : vector<128x784xf32> to vector<128x784xbf16>
    %c0_1 = arith.constant 0 : index
    %c0_2 = arith.constant 0 : index
    %2 = vector.load %arg2[%c0_1, %c0_2] : memref<784x128xbf16, #tpu.memory_space<vmem>>, vector<784x128xbf16>
    %cst = arith.constant dense<0.000000e+00> : vector<128x128xf32>
    %3 = tpu.matmul %1, %2, %cst {dimension_numbers = #tpu.dot_dimension_numbers<[1], [0], [0], [1], [0, 0, 1, 1], [], []>} : vector<128x784xbf16>, vector<784x128xbf16>, vector<128x128xf32> -> vector<128x128xf32>
    %c0_3 = arith.constant 0 : index
    %c0_4 = arith.constant 0 : index
    %4 = vector.load %arg3[%c0_3, %c0_4] : memref<1x128xf32, #tpu.memory_space<vmem>>, vector<1x128xf32>
    %5 = vector.broadcast %4 : vector<1x128xf32> to vector<128x128xf32>
    %6 = arith.addf %3, %5 : vector<128x128xf32>
    %cst_5 = arith.constant 0.000000e+00 : f32
    %7 = vector.broadcast %cst_5 : f32 to vector<128x128xf32>
    %8 = arith.maximumf %6, %7 : vector<128x128xf32>
    %9 = arith.truncf %8 : vector<128x128xf32> to vector<128x128xbf16>
    %c0_6 = arith.constant 0 : index
    %c0_7 = arith.constant 0 : index
    %10 = vector.load %arg4[%c0_6, %c0_7] : memref<128x128xbf16, #tpu.memory_space<vmem>>, vector<128x128xbf16>
    %cst_8 = arith.constant dense<0.000000e+00> : vector<128x128xf32>
    %11 = tpu.matmul %9, %10, %cst_8 {dimension_numbers = #tpu.dot_dimension_numbers<[1], [0], [0], [1], [0, 0, 1, 1], [], []>} : vector<128x128xbf16>, vector<128x128xbf16>, vector<128x128xf32> -> vector<128x128xf32>
    %c0_9 = arith.constant 0 : index
    %c0_10 = arith.constant 0 : index
    %12 = vector.load %arg5[%c0_9, %c0_10] : memref<1x128xf32, #tpu.memory_space<vmem>>, vector<1x128xf32>
    %13 = vector.broadcast %12 : vector<1x128xf32> to vector<128x128xf32>
    %14 = arith.addf %11, %13 : vector<128x128xf32>
    %c0_11 = arith.constant 0 : index
    %c0_12 = arith.constant 0 : index
    %15 = vector.load %arg6[%c0_11, %c0_12] : memref<128x128xf32, #tpu.memory_space<vmem>>, vector<128x128xf32>
    tpu.vector_store %arg6[%c0_11, %c0_12], %14 {strides = array<i32>} : memref<128x128xf32, #tpu.memory_space<vmem>>, vector<128x128xf32>,
    return
  }
  func.func @transform_0(%arg0: i32) -> (i32, i32) {
    %c0_i32 = arith.constant 0 : i32
    %c0_i32_0 = arith.constant 0 : i32
    return %arg0, %c0_i32 : i32, i32
  }
  func.func @transform_1(%arg0: i32) -> (i32, i32) {
    %c0_i32 = arith.constant 0 : i32
    %c0_i32_0 = arith.constant 0 : i32
    %c0_i32_1 = arith.constant 0 : i32
    return %c0_i32, %c0_i32_0 : i32, i32
  }
  func.func @transform_2(%arg0: i32) -> (i32, i32) {
    %c0_i32 = arith.constant 0 : i32
    %c0_i32_0 = arith.constant 0 : i32
    %c0_i32_1 = arith.constant 0 : i32
    return %c0_i32, %c0_i32_0 : i32, i32
  }
  func.func @transform_3(%arg0: i32) -> (i32, i32) {
    %c0_i32 = arith.constant 0 : i32
    %c0_i32_0 = arith.constant 0 : i32
    %c0_i32_1 = arith.constant 0 : i32
    return %c0_i32, %c0_i32_0 : i32, i32
  }
  func.func @transform_4(%arg0: i32) -> (i32, i32) {
    %c0_i32 = arith.constant 0 : i32
    %c0_i32_0 = arith.constant 0 : i32
    %c0_i32_1 = arith.constant 0 : i32
    return %c0_i32, %c0_i32_0 : i32, i32
  }
  func.func @transform_5(%arg0: i32) -> (i32, i32) {
    %c0_i32 = arith.constant 0 : i32
    %c0_i32_0 = arith.constant 0 : i32
    return %arg0, %c0_i32 : i32, i32
  }
}

</mosaic_0001>

<llo_original>
// kernel: tpu_custom_call.1
$region0: #{tpu_custom_call.1}
  #allocation0 [shape = 'u32[]', space=smem, size = 0x4, offset = 0x4, fixed_abs, tag = 'smem constant byte address 0x4 - core index']
  #allocation1 [shape = 'u32[144,128]{1,0:T(1,128)}', space=vmem, size = 0x12000, scoped, tag = 'internal scratch']
  %s0 = inlined_call_operand.vmem [shape: f32[128,784], index: 0, kind: input, shape index: {}]
  %s1 = inlined_call_operand.vmem [shape: bf16[784,128], index: 1, kind: input, shape index: {}]
  %s2 = inlined_call_operand.vmem [shape: f32[1,128], index: 2, kind: input, shape index: {}]
  %s3 = inlined_call_operand.vmem [shape: bf16[128,128], index: 3, kind: input, shape index: {}]
  %s4 = inlined_call_operand.vmem [shape: f32[1,128], index: 4, kind: input, shape index: {}]
  %s5 = inlined_call_operand.hbm [shape: f32[128,128], index: 5, kind: output, shape index: {}]
  %s6 = sld [smem:[#allocation0]]
  $region30: #{tpu_custom_call.1} parent=0
    _
  %s8 = ssub.s32 1, %s6
  %s9 = scalar_select 0, %s8, %s6
  $region1: #{tpu_custom_call.1} parent=0
    #allocation2 [shape = 'u8[65536]{0}', space=vmem, size = 0x10000, scoped, tag = 'output window, operand 0, single buffered']
    #allocation3 [shape = 's32[1]{0}', space=sflag, size = 0x4, scoped, tag = 'scoped memory for tpu_custom_call.1']
    %10 = vsyncpa [#allocation3], 0
    // Predicated region
    $region2: #{tpu_custom_call.1} parent=1 // pred_check
      _
    $region3: #{tpu_custom_call.1} parent=1 // pred_check_branch
      %12 = sbr.rel (0) target = $region5
    $region4: #{tpu_custom_call.1} parent=1 // pred_region
      _
    $region5: #{tpu_custom_call.1} parent=1 // pred_fallthru
      _
    // Predicated region
    $region6: #{tpu_custom_call.1} parent=1 // pred_check
      _
    $region7: #{tpu_custom_call.1} parent=1 // pred_check_branch
      %14 = sbr.rel (0) target = $region9
    $region8: #{tpu_custom_call.1} parent=1 // pred_region
      _
    $region9: #{tpu_custom_call.1} parent=1 // pred_fallthru
      _
    // Predicated region
    $region10: #{tpu_custom_call.1} parent=1 // pred_check
      _
    $region11: #{tpu_custom_call.1} parent=1 // pred_check_branch
      %16 = sbr.rel (0) target = $region13
    $region12: #{tpu_custom_call.1} parent=1 // pred_region
      _
    $region13: #{tpu_custom_call.1} parent=1 // pred_fallthru
      _
    // Predicated region
    $region14: #{tpu_custom_call.1} parent=1 // pred_check
      _
    $region15: #{tpu_custom_call.1} parent=1 // pred_check_branch
      %18 = sbr.rel (0) target = $region17
    $region16: #{tpu_custom_call.1} parent=1 // pred_region
      _
    $region17: #{tpu_custom_call.1} parent=1 // pred_fallthru
      _
    // Predicated region
    $region18: #{tpu_custom_call.1} parent=1 // pred_check
      _
    $region19: #{tpu_custom_call.1} parent=1 // pred_check_branch
      %20 = sbr.rel (0) target = $region21
    $region20: #{tpu_custom_call.1} parent=1 // pred_region
      _
    $region21: #{tpu_custom_call.1} parent=1 // pred_fallthru
      _
    %v22 = vld [vmem:[%s0] sm:$0xff]
    %v23 = vld [vmem:[%s0 + $0x8] sm:$0xff]
    %v24 = vld [vmem:[%s0 + $0x10] sm:$0xff]
    %v25 = vld [vmem:[%s0 + $0x18] sm:$0xff]
    %v26 = vld [vmem:[%s0 + $0x20] sm:$0xff]
    %v27 = vld [vmem:[%s0 + $0x28] sm:$0xff]
    %v28 = vld [vmem:[%s0 + $0x30] sm:$0xff]
    %v29 = vld [vmem:[%s0 + $0x38] sm:$0xff]
    %v30 = vld [vmem:[%s0 + $0x40] sm:$0xff]
    %v31 = vld [vmem:[%s0 + $0x48] sm:$0xff]
    %v32 = vld [vmem:[%s0 + $0x50] sm:$0xff]
    %v33 = vld [vmem:[%s0 + $0x58] sm:$0xff]
    %v34 = vld [vmem:[%s0 + $0x60] sm:$0xff]
    %v35 = vld [vmem:[%s0 + $0x68] sm:$0xff]
    %v36 = vld [vmem:[%s0 + $0x70] sm:$0xff]
    %v37 = vld [vmem:[%s0 + $0x78] sm:$0xff]
    %v38 = vld [vmem:[%s0 + $0x80] sm:$0xff]
    %v39 = vld [vmem:[%s0 + $0x88] sm:$0xff]
    %v40 = vld [vmem:[%s0 + $0x90] sm:$0xff]
    %v41 = vld [vmem:[%s0 + $0x98] sm:$0xff]
    %v42 = vld [vmem:[%s0 + $0xa0] sm:$0xff]
    %v43 = vld [vmem:[%s0 + $0xa8] sm:$0xff]
    %v44 = vld [vmem:[%s0 + $0xb0] sm:$0xff]
    %v45 = vld [vmem:[%s0 + $0xb8] sm:$0xff]
    %v46 = vld [vmem:[%s0 + $0xc0] sm:$0xff]
    %v47 = vld [vmem:[%s0 + $0xc8] sm:$0xff]
    %v48 = vld [vmem:[%s0 + $0xd0] sm:$0xff]
    %v49 = vld [vmem:[%s0 + $0xd8] sm:$0xff]
    %v50 = vld [vmem:[%s0 + $0xe0] sm:$0xff]
    %v51 = vld [vmem:[%s0 + $0xe8] sm:$0xff]
    %v52 = vld [vmem:[%s0 + $0xf0] sm:$0xff]
    %v53 = vld [vmem:[%s0 + $0xf8] sm:$0xff]
    %v54 = vld [vmem:[%s0 + $0x100] sm:$0xff]
    %v55 = vld [vmem:[%s0 + $0x108] sm:$0xff]
    %v56 = vld [vmem:[%s0 + $0x110] sm:$0xff]
    %v57 = vld [vmem:[%s0 + $0x118] sm:$0xff]
    %v58 = vld [vmem:[%s0 + $0x120] sm:$0xff]
    %v59 = vld [vmem:[%s0 + $0x128] sm:$0xff]
    %v60 = vld [vmem:[%s0 + $0x130] sm:$0xff]
    %v61 = vld [vmem:[%s0 + $0x138] sm:$0xff]
    %v62 = vld [vmem:[%s0 + $0x140] sm:$0xff]
    %v63 = vld [vmem:[%s0 + $0x148] sm:$0xff]
    %v64 = vld [vmem:[%s0 + $0x150] sm:$0xff]
    %v65 = vld [vmem:[%s0 + $0x158] sm:$0xff]
    %v66 = vld [vmem:[%s0 + $0x160] sm:$0xff]
    %v67 = vld [vmem:[%s0 + $0x168] sm:$0xff]
    %v68 = vld [vmem:[%s0 + $0x170] sm:$0xff]
    %v69 = vld [vmem:[%s0 + $0x178] sm:$0xff]
    %v70 = vld [vmem:[%s0 + $0x180] sm:$0xff]
    %v71 = vld [vmem:[%s0 + $0x188] sm:$0xff]
    %v72 = vld [vmem:[%s0 + $0x190] sm:$0xff]
    %v73 = vld [vmem:[%s0 + $0x198] sm:$0xff]
    %v74 = vld [vmem:[%s0 + $0x1a0] sm:$0xff]
    %v75 = vld [vmem:[%s0 + $0x1a8] sm:$0xff]
    %v76 = vld [vmem:[%s0 + $0x1b0] sm:$0xff]
    %v77 = vld [vmem:[%s0 + $0x1b8] sm:$0xff]
    %v78 = vld [vmem:[%s0 + $0x1c0] sm:$0xff]
    %v79 = vld [vmem:[%s0 + $0x1c8] sm:$0xff]
    %v80 = vld [vmem:[%s0 + $0x1d0] sm:$0xff]
    %v81 = vld [vmem:[%s0 + $0x1d8] sm:$0xff]
    %v82 = vld [vmem:[%s0 + $0x1e0] sm:$0xff]
    %v83 = vld [vmem:[%s0 + $0x1e8] sm:$0xff]
    %v84 = vld [vmem:[%s0 + $0x1f0] sm:$0xff]
    %v85 = vld [vmem:[%s0 + $0x1f8] sm:$0xff]
    %v86 = vld [vmem:[%s0 + $0x200] sm:$0xff]
    %v87 = vld [vmem:[%s0 + $0x208] sm:$0xff]
    %v88 = vld [vmem:[%s0 + $0x210] sm:$0xff]
    %v89 = vld [vmem:[%s0 + $0x218] sm:$0xff]
    %v90 = vld [vmem:[%s0 + $0x220] sm:$0xff]
    %v91 = vld [vmem:[%s0 + $0x228] sm:$0xff]
    %v92 = vld [vmem:[%s0 + $0x230] sm:$0xff]
    %v93 = vld [vmem:[%s0 + $0x238] sm:$0xff]
    %v94 = vld [vmem:[%s0 + $0x240] sm:$0xff]
    %v95 = vld [vmem:[%s0 + $0x248] sm:$0xff]
    %v96 = vld [vmem:[%s0 + $0x250] sm:$0xff]
    %v97 = vld [vmem:[%s0 + $0x258] sm:$0xff]
    %v98 = vld [vmem:[%s0 + $0x260] sm:$0xff]
    %v99 = vld [vmem:[%s0 + $0x268] sm:$0xff]
    %v100 = vld [vmem:[%s0 + $0x270] sm:$0xff]
    %v101 = vld [vmem:[%s0 + $0x278] sm:$0xff]
    %v102 = vld [vmem:[%s0 + $0x280] sm:$0xff]
    %v103 = vld [vmem:[%s0 + $0x288] sm:$0xff]
    %v104 = vld [vmem:[%s0 + $0x290] sm:$0xff]
    %v105 = vld [vmem:[%s0 + $0x298] sm:$0xff]
    %v106 = vld [vmem:[%s0 + $0x2a0] sm:$0xff]
    %v107 = vld [vmem:[%s0 + $0x2a8] sm:$0xff]
    %v108 = vld [vmem:[%s0 + $0x2b0] sm:$0xff]
    %v109 = vld [vmem:[%s0 + $0x2b8] sm:$0xff]
    %v110 = vld [vmem:[%s0 + $0x2c0] sm:$0xff]
    %v111 = vld [vmem:[%s0 + $0x2c8] sm:$0xff]
    %v112 = vld [vmem:[%s0 + $0x2d0] sm:$0xff]
    %v113 = vld [vmem:[%s0 + $0x2d8] sm:$0xff]
    %v114 = vld [vmem:[%s0 + $0x2e0] sm:$0xff]
    %v115 = vld [vmem:[%s0 + $0x2e8] sm:$0xff]
    %v116 = vld [vmem:[%s0 + $0x2f0] sm:$0xff]
    %v117 = vld [vmem:[%s0 + $0x2f8] sm:$0xff]
    %v118 = vld [vmem:[%s0 + $0x300] sm:$0xff]
    %v119 = vld [vmem:[%s0 + $0x308] sm:$0xff]
    %v120 = vld [vmem:[%s0 + $0x310] sm:$0xff]
    %v121 = vld [vmem:[%s0 + $0x318] sm:$0xff]
    %v122 = vld [vmem:[%s0 + $0x320] sm:$0xff]
    %v123 = vld [vmem:[%s0 + $0x328] sm:$0xff]
    %v124 = vld [vmem:[%s0 + $0x330] sm:$0xff]
    %v125 = vld [vmem:[%s0 + $0x338] sm:$0xff]
    %v126 = vld [vmem:[%s0 + $0x340] sm:$0xff]
    %v127 = vld [vmem:[%s0 + $0x348] sm:$0xff]
    %v128 = vld [vmem:[%s0 + $0x350] sm:$0xff]
    %v129 = vld [vmem:[%s0 + $0x358] sm:$0xff]
    %v130 = vld [vmem:[%s0 + $0x360] sm:$0xff]
    %v131 = vld [vmem:[%s0 + $0x368] sm:$0xff]
    %v132 = vld [vmem:[%s0 + $0x370] sm:$0xff]
    %v133 = vld [vmem:[%s0 + $0x378] sm:$0xff]
    %v134 = vpack.c.bf16 %v29, %v22
    %v135 = vpack.c.bf16 %v30, %v23
    %v136 = vpack.c.bf16 %v31, %v24
    %v137 = vpack.c.bf16 %v32, %v25
    %v138 = vpack.c.bf16 %v33, %v26
    %v139 = vpack.c.bf16 %v34, %v27
    %v140 = vpack.c.bf16 %v35, %v28
    %v141 = vpack.c.bf16 %v43, %v36
    %v142 = vpack.c.bf16 %v44, %v37
    %v143 = vpack.c.bf16 %v45, %v38
    %v144 = vpack.c.bf16 %v46, %v39
    %v145 = vpack.c.bf16 %v47, %v40
    %v146 = vpack.c.bf16 %v48, %v41
    %v147 = vpack.c.bf16 %v49, %v42
    %v148 = vpack.c.bf16 %v57, %v50
    %v149 = vpack.c.bf16 %v58, %v51
    %v150 = vpack.c.bf16 %v59, %v52
    %v151 = vpack.c.bf16 %v60, %v53
    %v152 = vpack.c.bf16 %v61, %v54
    %v153 = vpack.c.bf16 %v62, %v55
    %v154 = vpack.c.bf16 %v63, %v56
    %v155 = vpack.c.bf16 %v71, %v64
    %v156 = vpack.c.bf16 %v72, %v65
    %v157 = vpack.c.bf16 %v73, %v66
    %v158 = vpack.c.bf16 %v74, %v67
    %v159 = vpack.c.bf16 %v75, %v68
    %v160 = vpack.c.bf16 %v76, %v69
    %v161 = vpack.c.bf16 %v77, %v70
    %v162 = vpack.c.bf16 %v85, %v78
    %v163 = vpack.c.bf16 %v86, %v79
    %v164 = vpack.c.bf16 %v87, %v80
    %v165 = vpack.c.bf16 %v88, %v81
    %v166 = vpack.c.bf16 %v89, %v82
    %v167 = vpack.c.bf16 %v90, %v83
    %v168 = vpack.c.bf16 %v91, %v84
    %v169 = vpack.c.bf16 %v99, %v92
    %v170 = vpack.c.bf16 %v100, %v93
    %v171 = vpack.c.bf16 %v101, %v94
    %v172 = vpack.c.bf16 %v102, %v95
    %v173 = vpack.c.bf16 %v103, %v96
    %v174 = vpack.c.bf16 %v104, %v97
    %v175 = vpack.c.bf16 %v105, %v98
    %v176 = vpack.c.bf16 %v113, %v106
    %v177 = vpack.c.bf16 %v114, %v107
    %v178 = vpack.c.bf16 %v115, %v108
    %v179 = vpack.c.bf16 %v116, %v109
    %v180 = vpack.c.bf16 %v117, %v110
    %v181 = vpack.c.bf16 %v118, %v111
    %v182 = vpack.c.bf16 %v119, %v112
    %v183 = vpack.c.bf16 %v127, %v120
    %v184 = vpack.c.bf16 %v128, %v121
    %v185 = vpack.c.bf16 %v129, %v122
    %v186 = vpack.c.bf16 %v130, %v123
    %v187 = vpack.c.bf16 %v131, %v124
    %v188 = vpack.c.bf16 %v132, %v125
    %v189 = vpack.c.bf16 %v133, %v126
    %v190 = vld [vmem:[%s1] sm:$0xf]
    %v191 = vld [vmem:[%s1 + $0x4] sm:$0xf]
    %v192 = vld [vmem:[%s1 + $0x8] sm:$0xf]
    %v193 = vld [vmem:[%s1 + $0xc] sm:$0xf]
    %v194 = vld [vmem:[%s1 + $0x10] sm:$0xf]
    %v195 = vld [vmem:[%s1 + $0x14] sm:$0xf]
    %v196 = vld [vmem:[%s1 + $0x18] sm:$0xf]
    %v197 = vld [vmem:[%s1 + $0x1c] sm:$0xf]
    %v198 = vld [vmem:[%s1 + $0x20] sm:$0xf]
    %v199 = vld [vmem:[%s1 + $0x24] sm:$0xf]
    %v200 = vld [vmem:[%s1 + $0x28] sm:$0xf]
    %v201 = vld [vmem:[%s1 + $0x2c] sm:$0xf]
    %v202 = vld [vmem:[%s1 + $0x30] sm:$0xf]
    %v203 = vld [vmem:[%s1 + $0x34] sm:$0xf]
    %v204 = vld [vmem:[%s1 + $0x38] sm:$0xf]
    %v205 = vld [vmem:[%s1 + $0x3c] sm:$0xf]
    %v206 = vld [vmem:[%s1 + $0x40] sm:$0xf]
    %v207 = vld [vmem:[%s1 + $0x44] sm:$0xf]
    %v208 = vld [vmem:[%s1 + $0x48] sm:$0xf]
    %v209 = vld [vmem:[%s1 + $0x4c] sm:$0xf]
    %v210 = vld [vmem:[%s1 + $0x50] sm:$0xf]
    %v211 = vld [vmem:[%s1 + $0x54] sm:$0xf]
    %v212 = vld [vmem:[%s1 + $0x58] sm:$0xf]
    %v213 = vld [vmem:[%s1 + $0x5c] sm:$0xf]
    %v214 = vld [vmem:[%s1 + $0x60] sm:$0xf]
    %v215 = vld [vmem:[%s1 + $0x64] sm:$0xf]
    %v216 = vld [vmem:[%s1 + $0x68] sm:$0xf]
    %v217 = vld [vmem:[%s1 + $0x6c] sm:$0xf]
    %v218 = vld [vmem:[%s1 + $0x70] sm:$0xf]
    %v219 = vld [vmem:[%s1 + $0x74] sm:$0xf]
    %v220 = vld [vmem:[%s1 + $0x78] sm:$0xf]
    %v221 = vld [vmem:[%s1 + $0x7c] sm:$0xf]
    %v222 = vld [vmem:[%s1 + $0x80] sm:$0xf]
    %v223 = vld [vmem:[%s1 + $0x84] sm:$0xf]
    %v224 = vld [vmem:[%s1 + $0x88] sm:$0xf]
    %v225 = vld [vmem:[%s1 + $0x8c] sm:$0xf]
    %v226 = vld [vmem:[%s1 + $0x90] sm:$0xf]
    %v227 = vld [vmem:[%s1 + $0x94] sm:$0xf]
    %v228 = vld [vmem:[%s1 + $0x98] sm:$0xf]
    %v229 = vld [vmem:[%s1 + $0x9c] sm:$0xf]
    %v230 = vld [vmem:[%s1 + $0xa0] sm:$0xf]
    %v231 = vld [vmem:[%s1 + $0xa4] sm:$0xf]
    %v232 = vld [vmem:[%s1 + $0xa8] sm:$0xf]
    %v233 = vld [vmem:[%s1 + $0xac] sm:$0xf]
    %v234 = vld [vmem:[%s1 + $0xb0] sm:$0xf]
    %v235 = vld [vmem:[%s1 + $0xb4] sm:$0xf]
    %v236 = vld [vmem:[%s1 + $0xb8] sm:$0xf]
    %v237 = vld [vmem:[%s1 + $0xbc] sm:$0xf]
    %v238 = vld [vmem:[%s1 + $0xc0] sm:$0xf]
    %v239 = vld [vmem:[%s1 + $0xc4] sm:$0xf]
    %v240 = vld [vmem:[%s1 + $0xc8] sm:$0xf]
    %v241 = vld [vmem:[%s1 + $0xcc] sm:$0xf]
    %v242 = vld [vmem:[%s1 + $0xd0] sm:$0xf]
    %v243 = vld [vmem:[%s1 + $0xd4] sm:$0xf]
    %v244 = vld [vmem:[%s1 + $0xd8] sm:$0xf]
    %v245 = vld [vmem:[%s1 + $0xdc] sm:$0xf]
    %v246 = vld [vmem:[%s1 + $0xe0] sm:$0xf]
    %v247 = vld [vmem:[%s1 + $0xe4] sm:$0xf]
    %v248 = vld [vmem:[%s1 + $0xe8] sm:$0xf]
    %v249 = vld [vmem:[%s1 + $0xec] sm:$0xf]
    %v250 = vld [vmem:[%s1 + $0xf0] sm:$0xf]
    %v251 = vld [vmem:[%s1 + $0xf4] sm:$0xf]
    %v252 = vld [vmem:[%s1 + $0xf8] sm:$0xf]
    %v253 = vld [vmem:[%s1 + $0xfc] sm:$0xf]
    %v254 = vld [vmem:[%s1 + $0x100] sm:$0xf]
    %v255 = vld [vmem:[%s1 + $0x104] sm:$0xf]
    %v256 = vld [vmem:[%s1 + $0x108] sm:$0xf]
    %v257 = vld [vmem:[%s1 + $0x10c] sm:$0xf]
    %v258 = vld [vmem:[%s1 + $0x110] sm:$0xf]
    %v259 = vld [vmem:[%s1 + $0x114] sm:$0xf]
    %v260 = vld [vmem:[%s1 + $0x118] sm:$0xf]
    %v261 = vld [vmem:[%s1 + $0x11c] sm:$0xf]
    %v262 = vld [vmem:[%s1 + $0x120] sm:$0xf]
    %v263 = vld [vmem:[%s1 + $0x124] sm:$0xf]
    %v264 = vld [vmem:[%s1 + $0x128] sm:$0xf]
    %v265 = vld [vmem:[%s1 + $0x12c] sm:$0xf]
    %v266 = vld [vmem:[%s1 + $0x130] sm:$0xf]
    %v267 = vld [vmem:[%s1 + $0x134] sm:$0xf]
    %v268 = vld [vmem:[%s1 + $0x138] sm:$0xf]
    %v269 = vld [vmem:[%s1 + $0x13c] sm:$0xf]
    %v270 = vld [vmem:[%s1 + $0x140] sm:$0xf]
    %v271 = vld [vmem:[%s1 + $0x144] sm:$0xf]
    %v272 = vld [vmem:[%s1 + $0x148] sm:$0xf]
    %v273 = vld [vmem:[%s1 + $0x14c] sm:$0xf]
    %v274 = vld [vmem:[%s1 + $0x150] sm:$0xf]
    %v275 = vld [vmem:[%s1 + $0x154] sm:$0xf]
    %v276 = vld [vmem:[%s1 + $0x158] sm:$0xf]
    %v277 = vld [vmem:[%s1 + $0x15c] sm:$0xf]
    %v278 = vld [vmem:[%s1 + $0x160] sm:$0xf]
    %v279 = vld [vmem:[%s1 + $0x164] sm:$0xf]
    %v280 = vld [vmem:[%s1 + $0x168] sm:$0xf]
    %v281 = vld [vmem:[%s1 + $0x16c] sm:$0xf]
    %v282 = vld [vmem:[%s1 + $0x170] sm:$0xf]
    %v283 = vld [vmem:[%s1 + $0x174] sm:$0xf]
    %v284 = vld [vmem:[%s1 + $0x178] sm:$0xf]
    %v285 = vld [vmem:[%s1 + $0x17c] sm:$0xf]
    %v286 = vld [vmem:[%s1 + $0x180] sm:$0xf]
    %v287 = vld [vmem:[%s1 + $0x184] sm:$0xf]
    %v288 = vld [vmem:[%s2] sm:$0x1]
    %v290 = vlaneseq
    %v291 = vshrl.u32 %v290, 7
    %v292 = vsub.s32 0, %v291
    %v293 = vrot.slane %v288, %v292
    %v393 = vunpack.c.l.b16 %v190
    %v394 = vunpack.c.l.b16 %v191
    %v395 = vunpack.c.l.b16 %v192
    %v396 = vunpack.c.l.b16 %v193
    %v397 = vunpack.c.l.b16 %v194
    %v398 = vunpack.c.l.b16 %v195
    %v399 = vunpack.c.l.b16 %v196
    %v400 = vunpack.c.l.b16 %v197
    %v401 = vunpack.c.l.b16 %v198
    %v402 = vunpack.c.l.b16 %v199
    %v403 = vunpack.c.l.b16 %v200
    %v404 = vunpack.c.l.b16 %v201
    %v405 = vunpack.c.l.b16 %v202
    %v406 = vunpack.c.l.b16 %v203
    %v407 = vunpack.c.l.b16 %v204
    %v408 = vunpack.c.l.b16 %v205
    %v409 = vunpack.c.l.b16 %v206
    %v410 = vunpack.c.l.b16 %v207
    %v411 = vunpack.c.l.b16 %v208
    %v412 = vunpack.c.l.b16 %v209
    %v413 = vunpack.c.l.b16 %v210
    %v414 = vunpack.c.l.b16 %v211
    %v415 = vunpack.c.l.b16 %v212
    %v416 = vunpack.c.l.b16 %v213
    %v417 = vunpack.c.l.b16 %v214
    %v418 = vunpack.c.l.b16 %v215
    %v419 = vunpack.c.l.b16 %v216
    %v420 = vunpack.c.l.b16 %v217
    %v421 = vunpack.c.l.b16 %v218
    %v422 = vunpack.c.l.b16 %v219
    %v423 = vunpack.c.l.b16 %v220
    %v424 = vunpack.c.l.b16 %v221
    %v425 = vunpack.c.l.b16 %v222
    %v426 = vunpack.c.l.b16 %v223
    %v427 = vunpack.c.l.b16 %v224
    %v428 = vunpack.c.l.b16 %v225
    %v429 = vunpack.c.l.b16 %v226
    %v430 = vunpack.c.l.b16 %v227
    %v431 = vunpack.c.l.b16 %v228
    %v432 = vunpack.c.l.b16 %v229
    %v433 = vunpack.c.l.b16 %v230
    %v434 = vunpack.c.l.b16 %v231
    %v435 = vunpack.c.l.b16 %v232
    %v436 = vunpack.c.l.b16 %v233
    %v437 = vunpack.c.l.b16 %v234
    %v438 = vunpack.c.l.b16 %v235
    %v439 = vunpack.c.l.b16 %v236
    %v440 = vunpack.c.l.b16 %v237
    %v441 = vunpack.c.l.b16 %v238
    %v442 = vunpack.c.l.b16 %v239
    %v443 = vunpack.c.l.b16 %v240
    %v444 = vunpack.c.l.b16 %v241
    %v445 = vunpack.c.l.b16 %v242
    %v446 = vunpack.c.l.b16 %v243
    %v447 = vunpack.c.l.b16 %v244
    %v448 = vunpack.c.l.b16 %v245
    %v449 = vunpack.c.l.b16 %v246
    %v450 = vunpack.c.l.b16 %v247
    %v451 = vunpack.c.l.b16 %v248
    %v452 = vunpack.c.l.b16 %v249
    %v453 = vunpack.c.l.b16 %v250
    %v454 = vunpack.c.l.b16 %v251
    %v455 = vunpack.c.l.b16 %v252
    %v456 = vunpack.c.l.b16 %v253
    %v457 = vunpack.c.l.b16 %v254
    %v458 = vunpack.c.l.b16 %v255
    %v459 = vunpack.c.l.b16 %v256
    %v460 = vunpack.c.l.b16 %v257
    %v461 = vunpack.c.l.b16 %v258
    %v462 = vunpack.c.l.b16 %v259
    %v463 = vunpack.c.l.b16 %v260
    %v464 = vunpack.c.l.b16 %v261
    %v465 = vunpack.c.l.b16 %v262
    %v466 = vunpack.c.l.b16 %v263
    %v467 = vunpack.c.l.b16 %v264
    %v468 = vunpack.c.l.b16 %v265
    %v469 = vunpack.c.l.b16 %v266
    %v470 = vunpack.c.l.b16 %v267
    %v471 = vunpack.c.l.b16 %v268
    %v472 = vunpack.c.l.b16 %v269
    %v473 = vunpack.c.l.b16 %v270
    %v474 = vunpack.c.l.b16 %v271
    %v475 = vunpack.c.l.b16 %v272
    %v476 = vunpack.c.l.b16 %v273
    %v477 = vunpack.c.l.b16 %v274
    %v478 = vunpack.c.l.b16 %v275
    %v479 = vunpack.c.l.b16 %v276
    %v480 = vunpack.c.l.b16 %v277
    %v481 = vunpack.c.l.b16 %v278
    %v482 = vunpack.c.l.b16 %v279
    %v483 = vunpack.c.l.b16 %v280
    %v484 = vunpack.c.l.b16 %v281
    %v485 = vunpack.c.l.b16 %v282
    %v486 = vunpack.c.l.b16 %v283
    %v487 = vunpack.c.l.b16 %v284
    %v488 = vunpack.c.l.b16 %v285
    %v489 = vunpack.c.l.b16 %v286
    %v490 = vunpack.c.l.b16 %v287
    %v491 = vpack.c.b16 %v394, %v393
    %v492 = vpack.c.b16 %v396, %v395
    %v493 = vpack.c.b16 %v398, %v397
    %v494 = vpack.c.b16 %v400, %v399
    %v495 = vpack.c.b16 %v402, %v401
    %v496 = vpack.c.b16 %v404, %v403
    %v497 = vpack.c.b16 %v406, %v405
    %v498 = vpack.c.b16 %v408, %v407
    %v499 = vpack.c.b16 %v410, %v409
    %v500 = vpack.c.b16 %v412, %v411
    %v501 = vpack.c.b16 %v414, %v413
    %v502 = vpack.c.b16 %v416, %v415
    %v503 = vpack.c.b16 %v418, %v417
    %v504 = vpack.c.b16 %v420, %v419
    %v505 = vpack.c.b16 %v422, %v421
    %v506 = vpack.c.b16 %v424, %v423
    %v507 = vpack.c.b16 %v426, %v425
    %v508 = vpack.c.b16 %v428, %v427
    %v509 = vpack.c.b16 %v430, %v429
    %v510 = vpack.c.b16 %v432, %v431
    %v511 = vpack.c.b16 %v434, %v433
    %v512 = vpack.c.b16 %v436, %v435
    %v513 = vpack.c.b16 %v438, %v437
    %v514 = vpack.c.b16 %v440, %v439
    %v515 = vpack.c.b16 %v442, %v441
    %v516 = vpack.c.b16 %v444, %v443
    %v517 = vpack.c.b16 %v446, %v445
    %v518 = vpack.c.b16 %v448, %v447
    %v519 = vpack.c.b16 %v450, %v449
    %v520 = vpack.c.b16 %v452, %v451
    %v521 = vpack.c.b16 %v454, %v453
    %v522 = vpack.c.b16 %v456, %v455
    %v523 = vpack.c.b16 %v458, %v457
    %v524 = vpack.c.b16 %v460, %v459
    %v525 = vpack.c.b16 %v462, %v461
    %v526 = vpack.c.b16 %v464, %v463
    %v527 = vpack.c.b16 %v466, %v465
    %v528 = vpack.c.b16 %v468, %v467
    %v529 = vpack.c.b16 %v470, %v469
    %v530 = vpack.c.b16 %v472, %v471
    %v531 = vpack.c.b16 %v474, %v473
    %v532 = vpack.c.b16 %v476, %v475
    %v533 = vpack.c.b16 %v478, %v477
    %v534 = vpack.c.b16 %v480, %v479
    %v535 = vpack.c.b16 %v482, %v481
    %v536 = vpack.c.b16 %v484, %v483
    %v537 = vpack.c.b16 %v486, %v485
    %v538 = vpack.c.b16 %v488, %v487
    %v539 = vpack.c.b16 %v490, %v489
    %vm589 = vcmask 130048
    %v591 = vsel %vm589, %v140, 0
    %v594 = vsel %vm589, %v147, 0
    %v597 = vsel %vm589, %v154, 0
    %v600 = vsel %vm589, %v161, 0
    %v603 = vsel %vm589, %v168, 0
    %v606 = vsel %vm589, %v175, 0
    %v609 = vsel %vm589, %v182, 0
    %v612 = vsel %vm589, %v189, 0
    %614 = vmatprep.subr.bf16.mxu0 0
    %615 = vmatpush1.bf16.msra.mxu0 %v491
    %616 = vmatprep.subr.bf16.mxu0 0
    %617 = vmatpush1.bf16.msra.mxu0 %v492
    %618 = vmatprep.subr.bf16.mxu0 0
    %619 = vmatpush1.bf16.msra.mxu0 %v493
    %620 = vmatprep.subr.bf16.mxu0 0
    %621 = vmatpush1.bf16.msra.mxu0 %v494
    %622 = vmatprep.subr.bf16.mxu0 0
    %623 = vmatpush1.bf16.msra.mxu0 %v495
    %624 = vmatprep.subr.bf16.mxu0 0
    %625 = vmatpush1.bf16.msra.mxu0 %v496
    %626 = vmatprep.subr.bf16.mxu0 0
    %627 = vmatpush1.bf16.msra.mxu0 %v497
    %628 = vmatprep.subr.bf16.mxu0 0
    %629 = vmatpush1.bf16.msra.mxu0 %v498
    %630 = vmatprep.subr.bf16.mxu0 0
    %631 = vmatpush1.bf16.msra.mxu0 %v499
    %632 = vmatprep.subr.bf16.mxu0 0
    %633 = vmatpush1.bf16.msra.mxu0 %v500
    %634 = vmatprep.subr.bf16.mxu0 0
    %635 = vmatpush1.bf16.msra.mxu0 %v501
    %636 = vmatprep.subr.bf16.mxu0 0
    %637 = vmatpush1.bf16.msra.mxu0 %v502
    %638 = vmatprep.subr.bf16.mxu0 0
    %639 = vmatpush1.bf16.msra.mxu0 %v503
    %640 = vmatprep.subr.bf16.mxu0 0
    %641 = vmatpush1.bf16.msra.mxu0 %v504
    %642 = vmatprep.subr.bf16.mxu0 0
    %643 = vmatpush1.bf16.msra.mxu0 %v505
    %644 = vmatprep.subr.bf16.mxu0 0
    %645 = vmatpush1.bf16.msra.mxu0 %v506
    %646 = vmatprep.mubr.bf16.mxu0 %v135
    %647 = vmatmul.mubr.bf16.gmra.mrb[0].mxu0 %v134
    %v648 = vpop.f32.mrb[0].mxu0
    %v649 = vadd.f32 %v293, %v648
    %v650 = vpop.f32.mrb[0].mxu0
    %v651 = vpop.f32.mrb[0].mxu0
    %v652 = vadd.f32 %v293, %v651
    %v653 = vpop.f32.mrb[0].mxu0
    %654 = vmatprep.mubr.bf16.mxu0 %v142
    %655 = vmatmul.mubr.bf16.gmra.mrb[0].mxu0 %v141
    %v656 = vpop.f32.mrb[0].mxu0
    %v657 = vadd.f32 %v293, %v656
    %v658 = vpop.f32.mrb[0].mxu0
    %v659 = vpop.f32.mrb[0].mxu0
    %v660 = vadd.f32 %v293, %v659
    %v661 = vpop.f32.mrb[0].mxu0
    %662 = vmatprep.mubr.bf16.mxu0 %v149
    %663 = vmatmul.mubr.bf16.gmra.mrb[0].mxu0 %v148
    %v664 = vpop.f32.mrb[0].mxu0
    %v665 = vadd.f32 %v293, %v664
    %v666 = vpop.f32.mrb[0].mxu0
    %v667 = vpop.f32.mrb[0].mxu0
    %v668 = vadd.f32 %v293, %v667
    %v669 = vpop.f32.mrb[0].mxu0
    %670 = vmatprep.mubr.bf16.mxu0 %v156
    %671 = vmatmul.mubr.bf16.gmra.mrb[0].mxu0 %v155
    %v672 = vpop.f32.mrb[0].mxu0
    %v673 = vadd.f32 %v293, %v672
    %v674 = vpop.f32.mrb[0].mxu0
    %v675 = vpop.f32.mrb[0].mxu0
    %v676 = vadd.f32 %v293, %v675
    %v677 = vpop.f32.mrb[0].mxu0
    %678 = vmatprep.mubr.bf16.mxu0 %v163
    %679 = vmatmul.mubr.bf16.gmra.mrb[0].mxu0 %v162
    %v680 = vpop.f32.mrb[0].mxu0
    %v681 = vadd.f32 %v293, %v680
    %v682 = vpop.f32.mrb[0].mxu0
    %v683 = vpop.f32.mrb[0].mxu0
    %v684 = vadd.f32 %v293, %v683
    %v685 = vpop.f32.mrb[0].mxu0
    %686 = vmatprep.mubr.bf16.mxu0 %v170
    %687 = vmatmul.mubr.bf16.gmra.mrb[0].mxu0 %v169
    %v688 = vpop.f32.mrb[0].mxu0
    %v689 = vadd.f32 %v293, %v688
    %v690 = vpop.f32.mrb[0].mxu0
    %v691 = vpop.f32.mrb[0].mxu0
    %v692 = vadd.f32 %v293, %v691
    %v693 = vpop.f32.mrb[0].mxu0
    %694 = vmatprep.mubr.bf16.mxu0 %v177
    %695 = vmatmul.mubr.bf16.gmra.mrb[0].mxu0 %v176
    %v696 = vpop.f32.mrb[0].mxu0
    %v697 = vadd.f32 %v293, %v696
    %v698 = vpop.f32.mrb[0].mxu0
    %v699 = vpop.f32.mrb[0].mxu0
    %v700 = vadd.f32 %v293, %v699
    %v701 = vpop.f32.mrb[0].mxu0
    %702 = vmatprep.mubr.bf16.mxu0 %v184
    %703 = vmatmul.mubr.bf16.gmra.mrb[0].mxu0 %v183
    %v704 = vpop.f32.mrb[0].mxu0
    %v705 = vadd.f32 %v293, %v704
    %v706 = vpop.f32.mrb[0].mxu0
    %v707 = vpop.f32.mrb[0].mxu0
    %v708 = vadd.f32 %v293, %v707
    %v709 = vpop.f32.mrb[0].mxu0
    %710 = vdwg.mxu0
    %711 = vmatprep.subr.bf16.mxu0 0
    %712 = vmatpush1.bf16.msra.mxu0 %v507
    %713 = vmatprep.subr.bf16.mxu0 0
    %714 = vmatpush1.bf16.msra.mxu0 %v508
    %715 = vmatprep.subr.bf16.mxu0 0
    %716 = vmatpush1.bf16.msra.mxu0 %v509
    %717 = vmatprep.subr.bf16.mxu0 0
    %718 = vmatpush1.bf16.msra.mxu0 %v510
    %719 = vmatprep.subr.bf16.mxu0 0
    %720 = vmatpush1.bf16.msra.mxu0 %v511
    %721 = vmatprep.subr.bf16.mxu0 0
    %722 = vmatpush1.bf16.msra.mxu0 %v512
    %723 = vmatprep.subr.bf16.mxu0 0
    %724 = vmatpush1.bf16.msra.mxu0 %v513
    %725 = vmatprep.subr.bf16.mxu0 0
    %726 = vmatpush1.bf16.msra.mxu0 %v514
    %727 = vmatprep.subr.bf16.mxu0 0
    %728 = vmatpush1.bf16.msra.mxu0 %v515
    %729 = vmatprep.subr.bf16.mxu0 0
    %730 = vmatpush1.bf16.msra.mxu0 %v516
    %731 = vmatprep.subr.bf16.mxu0 0
    %732 = vmatpush1.bf16.msra.mxu0 %v517
    %733 = vmatprep.subr.bf16.mxu0 0
    %734 = vmatpush1.bf16.msra.mxu0 %v518
    %735 = vmatprep.subr.bf16.mxu0 0
    %736 = vmatpush1.bf16.msra.mxu0 %v519
    %737 = vmatprep.subr.bf16.mxu0 0
    %738 = vmatpush1.bf16.msra.mxu0 %v520
    %739 = vmatprep.subr.bf16.mxu0 0
    %740 = vmatpush1.bf16.msra.mxu0 %v521
    %741 = vmatprep.subr.bf16.mxu0 0
    %742 = vmatpush1.bf16.msra.mxu0 %v522
    %743 = vmatprep.mubr.bf16.mxu0 %v137
    %744 = vmatmul.mubr.bf16.gmra.mrb[0].mxu0 %v136
    %v745 = vpop.f32.mrb[0].mxu0
    %v746 = vadd.f32 %v649, %v745
    %v747 = vpop.f32.mrb[0].mxu0
    %v748 = vpop.f32.mrb[0].mxu0
    %v749 = vadd.f32 %v652, %v748
    %v750 = vpop.f32.mrb[0].mxu0
    %751 = vmatprep.mubr.bf16.mxu0 %v144
    %752 = vmatmul.mubr.bf16.gmra.mrb[0].mxu0 %v143
    %v753 = vpop.f32.mrb[0].mxu0
    %v754 = vadd.f32 %v657, %v753
    %v755 = vpop.f32.mrb[0].mxu0
    %v756 = vpop.f32.mrb[0].mxu0
    %v757 = vadd.f32 %v660, %v756
    %v758 = vpop.f32.mrb[0].mxu0
    %759 = vmatprep.mubr.bf16.mxu0 %v151
    %760 = vmatmul.mubr.bf16.gmra.mrb[0].mxu0 %v150
    %v761 = vpop.f32.mrb[0].mxu0
    %v762 = vadd.f32 %v665, %v761
    %v763 = vpop.f32.mrb[0].mxu0
    %v764 = vpop.f32.mrb[0].mxu0
    %v765 = vadd.f32 %v668, %v764
    %v766 = vpop.f32.mrb[0].mxu0
    %767 = vmatprep.mubr.bf16.mxu0 %v158
    %768 = vmatmul.mubr.bf16.gmra.mrb[0].mxu0 %v157
    %v769 = vpop.f32.mrb[0].mxu0
    %v770 = vadd.f32 %v673, %v769
    %v771 = vpop.f32.mrb[0].mxu0
    %v772 = vpop.f32.mrb[0].mxu0
    %v773 = vadd.f32 %v676, %v772
    %v774 = vpop.f32.mrb[0].mxu0
    %775 = vmatprep.mubr.bf16.mxu0 %v165
    %776 = vmatmul.mubr.bf16.gmra.mrb[0].mxu0 %v164
    %v777 = vpop.f32.mrb[0].mxu0
    %v778 = vadd.f32 %v681, %v777
    %v779 = vpop.f32.mrb[0].mxu0
    %v780 = vpop.f32.mrb[0].mxu0
    %v781 = vadd.f32 %v684, %v780
    %v782 = vpop.f32.mrb[0].mxu0
    %783 = vmatprep.mubr.bf16.mxu0 %v172
    %784 = vmatmul.mubr.bf16.gmra.mrb[0].mxu0 %v171
    %v785 = vpop.f32.mrb[0].mxu0
    %v786 = vadd.f32 %v689, %v785
    %v787 = vpop.f32.mrb[0].mxu0
    %v788 = vpop.f32.mrb[0].mxu0
    %v789 = vadd.f32 %v692, %v788
    %v790 = vpop.f32.mrb[0].mxu0
    %791 = vmatprep.mubr.bf16.mxu0 %v179
    %792 = vmatmul.mubr.bf16.gmra.mrb[0].mxu0 %v178
    %v793 = vpop.f32.mrb[0].mxu0
    %v794 = vadd.f32 %v697, %v793
    %v795 = vpop.f32.mrb[0].mxu0
    %v796 = vpop.f32.mrb[0].mxu0
    %v797 = vadd.f32 %v700, %v796
    %v798 = vpop.f32.mrb[0].mxu0
    %799 = vmatprep.mubr.bf16.mxu0 %v186
    %800 = vmatmul.mubr.bf16.gmra.mrb[0].mxu0 %v185
    %v801 = vpop.f32.mrb[0].mxu0
    %v802 = vadd.f32 %v705, %v801
    %v803 = vpop.f32.mrb[0].mxu0
    %v804 = vpop.f32.mrb[0].mxu0
    %v805 = vadd.f32 %v708, %v804
    %v806 = vpop.f32.mrb[0].mxu0
    %807 = vdwg.mxu0
    %808 = vmatprep.subr.bf16.mxu0 0
    %809 = vmatpush1.bf16.msra.mxu0 %v523
    %810 = vmatprep.subr.bf16.mxu0 0
    %811 = vmatpush1.bf16.msra.mxu0 %v524
    %812 = vmatprep.subr.bf16.mxu0 0
    %813 = vmatpush1.bf16.msra.mxu0 %v525
    %814 = vmatprep.subr.bf16.mxu0 0
    %815 = vmatpush1.bf16.msra.mxu0 %v526
    %816 = vmatprep.subr.bf16.mxu0 0
    %817 = vmatpush1.bf16.msra.mxu0 %v527
    %818 = vmatprep.subr.bf16.mxu0 0
    %819 = vmatpush1.bf16.msra.mxu0 %v528
    %820 = vmatprep.subr.bf16.mxu0 0
    %821 = vmatpush1.bf16.msra.mxu0 %v529
    %822 = vmatprep.subr.bf16.mxu0 0
    %823 = vmatpush1.bf16.msra.mxu0 %v530
    %824 = vmatprep.subr.bf16.mxu0 0
    %825 = vmatpush1.bf16.msra.mxu0 %v531
    %826 = vmatprep.subr.bf16.mxu0 0
    %827 = vmatpush1.bf16.msra.mxu0 %v532
    %828 = vmatprep.subr.bf16.mxu0 0
    %829 = vmatpush1.bf16.msra.mxu0 %v533
    %830 = vmatprep.subr.bf16.mxu0 0
    %831 = vmatpush1.bf16.msra.mxu0 %v534
    %832 = vmatprep.subr.bf16.mxu0 0
    %833 = vmatpush1.bf16.msra.mxu0 %v535
    %834 = vmatprep.subr.bf16.mxu0 0
    %835 = vmatpush1.bf16.msra.mxu0 %v536
    %836 = vmatprep.subr.bf16.mxu0 0
    %837 = vmatpush1.bf16.msra.mxu0 %v537
    %838 = vmatprep.subr.bf16.mxu0 0
    %839 = vmatpush1.bf16.msra.mxu0 %v538
    %840 = vmatprep.mubr.bf16.mxu0 %v139
    %841 = vmatmul.mubr.bf16.gmra.mrb[0].mxu0 %v138
    %v842 = vpop.f32.mrb[0].mxu0
    %v843 = vadd.f32 %v746, %v842
    %v844 = vpop.f32.mrb[0].mxu0
    %v845 = vpop.f32.mrb[0].mxu0
    %v846 = vadd.f32 %v749, %v845
    %v847 = vpop.f32.mrb[0].mxu0
    %848 = vmatprep.mubr.bf16.mxu0 %v146
    %849 = vmatmul.mubr.bf16.gmra.mrb[0].mxu0 %v145
    %v850 = vpop.f32.mrb[0].mxu0
    %v851 = vadd.f32 %v754, %v850
    %v852 = vpop.f32.mrb[0].mxu0
    %v853 = vpop.f32.mrb[0].mxu0
    %v854 = vadd.f32 %v757, %v853
    %v855 = vpop.f32.mrb[0].mxu0
    %856 = vmatprep.mubr.bf16.mxu0 %v153
    %857 = vmatmul.mubr.bf16.gmra.mrb[0].mxu0 %v152
    %v858 = vpop.f32.mrb[0].mxu0
    %v859 = vadd.f32 %v762, %v858
    %v860 = vpop.f32.mrb[0].mxu0
    %v861 = vpop.f32.mrb[0].mxu0
    %v862 = vadd.f32 %v765, %v861
    %v863 = vpop.f32.mrb[0].mxu0
    %864 = vmatprep.mubr.bf16.mxu0 %v160
    %865 = vmatmul.mubr.bf16.gmra.mrb[0].mxu0 %v159
    %v866 = vpop.f32.mrb[0].mxu0
    %v867 = vadd.f32 %v770, %v866
    %v868 = vpop.f32.mrb[0].mxu0
    %v869 = vpop.f32.mrb[0].mxu0
    %v870 = vadd.f32 %v773, %v869
    %v871 = vpop.f32.mrb[0].mxu0
    %872 = vmatprep.mubr.bf16.mxu0 %v167
    %873 = vmatmul.mubr.bf16.gmra.mrb[0].mxu0 %v166
    %v874 = vpop.f32.mrb[0].mxu0
    %v875 = vadd.f32 %v778, %v874
    %v876 = vpop.f32.mrb[0].mxu0
    %v877 = vpop.f32.mrb[0].mxu0
    %v878 = vadd.f32 %v781, %v877
    %v879 = vpop.f32.mrb[0].mxu0
    %880 = vmatprep.mubr.bf16.mxu0 %v174
    %881 = vmatmul.mubr.bf16.gmra.mrb[0].mxu0 %v173
    %v882 = vpop.f32.mrb[0].mxu0
    %v883 = vadd.f32 %v786, %v882
    %v884 = vpop.f32.mrb[0].mxu0
    %v885 = vpop.f32.mrb[0].mxu0
    %v886 = vadd.f32 %v789, %v885
    %v887 = vpop.f32.mrb[0].mxu0
    %888 = vmatprep.mubr.bf16.mxu0 %v181
    %889 = vmatmul.mubr.bf16.gmra.mrb[0].mxu0 %v180
    %v890 = vpop.f32.mrb[0].mxu0
    %v891 = vadd.f32 %v794, %v890
    %v892 = vpop.f32.mrb[0].mxu0
    %v893 = vpop.f32.mrb[0].mxu0
    %v894 = vadd.f32 %v797, %v893
    %v895 = vpop.f32.mrb[0].mxu0
    %896 = vmatprep.mubr.bf16.mxu0 %v188
    %897 = vmatmul.mubr.bf16.gmra.mrb[0].mxu0 %v187
    %v898 = vpop.f32.mrb[0].mxu0
    %v899 = vadd.f32 %v802, %v898
    %v900 = vpop.f32.mrb[0].mxu0
    %v901 = vpop.f32.mrb[0].mxu0
    %v902 = vadd.f32 %v805, %v901
    %v903 = vpop.f32.mrb[0].mxu0
    %904 = vdwg.mxu0
    %905 = vmatprep.subr.bf16.mxu0 0
    %906 = vmatpush1.bf16.msra.mxu0 %v539
    %907 = vmatprep.subr.bf16.mxu0 0
    %908 = vmatpush1.bf16.msra.mxu0 0
    %909 = vmatprep.subr.bf16.mxu0 0
    %910 = vmatpush1.bf16.msra.mxu0 0
    %911 = vmatprep.subr.bf16.mxu0 0
    %912 = vmatpush1.bf16.msra.mxu0 0
    %913 = vmatprep.subr.bf16.mxu0 0
    %914 = vmatpush1.bf16.msra.mxu0 0
    %915 = vmatprep.subr.bf16.mxu0 0
    %916 = vmatpush1.bf16.msra.mxu0 0
    %917 = vmatprep.subr.bf16.mxu0 0
    %918 = vmatpush1.bf16.msra.mxu0 0
    %919 = vmatprep.subr.bf16.mxu0 0
    %920 = vmatpush1.bf16.msra.mxu0 0
    %921 = vmatprep.subr.bf16.mxu0 0
    %922 = vmatpush1.bf16.msra.mxu0 0
    %923 = vmatprep.subr.bf16.mxu0 0
    %924 = vmatpush1.bf16.msra.mxu0 0
    %925 = vmatprep.subr.bf16.mxu0 0
    %926 = vmatpush1.bf16.msra.mxu0 0
    %927 = vmatprep.subr.bf16.mxu0 0
    %928 = vmatpush1.bf16.msra.mxu0 0
    %929 = vmatprep.subr.bf16.mxu0 0
    %930 = vmatpush1.bf16.msra.mxu0 0
    %931 = vmatprep.subr.bf16.mxu0 0
    %932 = vmatpush1.bf16.msra.mxu0 0
    %933 = vmatprep.subr.bf16.mxu0 0
    %934 = vmatpush1.bf16.msra.mxu0 0
    %935 = vmatprep.subr.bf16.mxu0 0
    %936 = vmatpush1.bf16.msra.mxu0 0
    %937 = vmatprep.mubr.bf16.mxu0 0
    %938 = vmatmul.mubr.bf16.gmra.mrb[0].mxu0 %v591
    %v939 = vpop.f32.mrb[0].mxu0
    %v940 = vadd.f32 %v843, %v939
    %v941 = vpop.f32.mrb[0].mxu0
    %v942 = vpop.f32.mrb[0].mxu0
    %v943 = vadd.f32 %v846, %v942
    %v944 = vpop.f32.mrb[0].mxu0
    %945 = vmatprep.mubr.bf16.mxu0 0
    %946 = vmatmul.mubr.bf16.gmra.mrb[0].mxu0 %v594
    %v947 = vpop.f32.mrb[0].mxu0
    %v948 = vadd.f32 %v851, %v947
    %v949 = vpop.f32.mrb[0].mxu0
    %v950 = vpop.f32.mrb[0].mxu0
    %v951 = vadd.f32 %v854, %v950
    %v952 = vpop.f32.mrb[0].mxu0
    %953 = vmatprep.mubr.bf16.mxu0 0
    %954 = vmatmul.mubr.bf16.gmra.mrb[0].mxu0 %v597
    %v955 = vpop.f32.mrb[0].mxu0
    %v956 = vadd.f32 %v859, %v955
    %v957 = vpop.f32.mrb[0].mxu0
    %v958 = vpop.f32.mrb[0].mxu0
    %v959 = vadd.f32 %v862, %v958
    %v960 = vpop.f32.mrb[0].mxu0
    %961 = vmatprep.mubr.bf16.mxu0 0
    %962 = vmatmul.mubr.bf16.gmra.mrb[0].mxu0 %v600
    %v963 = vpop.f32.mrb[0].mxu0
    %v964 = vadd.f32 %v867, %v963
    %v965 = vpop.f32.mrb[0].mxu0
    %v966 = vpop.f32.mrb[0].mxu0
    %v967 = vadd.f32 %v870, %v966
    %v968 = vpop.f32.mrb[0].mxu0
    %969 = vmatprep.mubr.bf16.mxu0 0
    %970 = vmatmul.mubr.bf16.gmra.mrb[0].mxu0 %v603
    %v971 = vpop.f32.mrb[0].mxu0
    %v972 = vadd.f32 %v875, %v971
    %v973 = vpop.f32.mrb[0].mxu0
    %v974 = vpop.f32.mrb[0].mxu0
    %v975 = vadd.f32 %v878, %v974
    %v976 = vpop.f32.mrb[0].mxu0
    %977 = vmatprep.mubr.bf16.mxu0 0
    %978 = vmatmul.mubr.bf16.gmra.mrb[0].mxu0 %v606
    %v979 = vpop.f32.mrb[0].mxu0
    %v980 = vadd.f32 %v883, %v979
    %v981 = vpop.f32.mrb[0].mxu0
    %v982 = vpop.f32.mrb[0].mxu0
    %v983 = vadd.f32 %v886, %v982
    %v984 = vpop.f32.mrb[0].mxu0
    %985 = vmatprep.mubr.bf16.mxu0 0
    %986 = vmatmul.mubr.bf16.gmra.mrb[0].mxu0 %v609
    %v987 = vpop.f32.mrb[0].mxu0
    %v988 = vadd.f32 %v891, %v987
    %v989 = vpop.f32.mrb[0].mxu0
    %v990 = vpop.f32.mrb[0].mxu0
    %v991 = vadd.f32 %v894, %v990
    %v992 = vpop.f32.mrb[0].mxu0
    %993 = vmatprep.mubr.bf16.mxu0 0
    %994 = vmatmul.mubr.bf16.gmra.mrb[0].mxu0 %v612
    %v995 = vpop.f32.mrb[0].mxu0
    %v996 = vadd.f32 %v899, %v995
    %v997 = vpop.f32.mrb[0].mxu0
    %v998 = vpop.f32.mrb[0].mxu0
    %v999 = vadd.f32 %v902, %v998
    %v1000 = vpop.f32.mrb[0].mxu0
    %1001 = vdwg.mxu0
    %v1002 = vmax.f32 %v940, 0.0
    %v1003 = vmax.f32 %v943, 0.0
    %v1004 = vmax.f32 %v948, 0.0
    %v1005 = vmax.f32 %v951, 0.0
    %v1006 = vmax.f32 %v956, 0.0
    %v1007 = vmax.f32 %v959, 0.0
    %v1008 = vmax.f32 %v964, 0.0
    %v1009 = vmax.f32 %v967, 0.0
    %v1010 = vmax.f32 %v972, 0.0
    %v1011 = vmax.f32 %v975, 0.0
    %v1012 = vmax.f32 %v980, 0.0
    %v1013 = vmax.f32 %v983, 0.0
    %v1014 = vmax.f32 %v988, 0.0
    %v1015 = vmax.f32 %v991, 0.0
    %v1016 = vmax.f32 %v996, 0.0
    %v1017 = vmax.f32 %v999, 0.0
    %v1018 = vpack.c.bf16 %v1003, %v1002
    %v1019 = vpack.c.bf16 %v1005, %v1004
    %v1020 = vpack.c.bf16 %v1007, %v1006
    %v1021 = vpack.c.bf16 %v1009, %v1008
    %v1022 = vpack.c.bf16 %v1011, %v1010
    %v1023 = vpack.c.bf16 %v1013, %v1012
    %v1024 = vpack.c.bf16 %v1015, %v1014
    %v1025 = vpack.c.bf16 %v1017, %v1016
    %v1026 = vld [vmem:[%s3] sm:$0xf]
    %v1027 = vld [vmem:[%s3 + $0x4] sm:$0xf]
    %v1028 = vld [vmem:[%s3 + $0x8] sm:$0xf]
    %v1029 = vld [vmem:[%s3 + $0xc] sm:$0xf]
    %v1030 = vld [vmem:[%s3 + $0x10] sm:$0xf]
    %v1031 = vld [vmem:[%s3 + $0x14] sm:$0xf]
    %v1032 = vld [vmem:[%s3 + $0x18] sm:$0xf]
    %v1033 = vld [vmem:[%s3 + $0x1c] sm:$0xf]
    %v1034 = vld [vmem:[%s3 + $0x20] sm:$0xf]
    %v1035 = vld [vmem:[%s3 + $0x24] sm:$0xf]
    %v1036 = vld [vmem:[%s3 + $0x28] sm:$0xf]
    %v1037 = vld [vmem:[%s3 + $0x2c] sm:$0xf]
    %v1038 = vld [vmem:[%s3 + $0x30] sm:$0xf]
    %v1039 = vld [vmem:[%s3 + $0x34] sm:$0xf]
    %v1040 = vld [vmem:[%s3 + $0x38] sm:$0xf]
    %v1041 = vld [vmem:[%s3 + $0x3c] sm:$0xf]
    %v1042 = vld [vmem:[%s4] sm:$0x1]
    %v1044 = vlaneseq
    %v1045 = vshrl.u32 %v1044, 7
    %v1046 = vsub.s32 0, %v1045
    %v1047 = vrot.slane %v1042, %v1046
    %v1065 = vunpack.c.l.b16 %v1026
    %v1066 = vunpack.c.l.b16 %v1027
    %v1067 = vunpack.c.l.b16 %v1028
    %v1068 = vunpack.c.l.b16 %v1029
    %v1069 = vunpack.c.l.b16 %v1030
    %v1070 = vunpack.c.l.b16 %v1031
    %v1071 = vunpack.c.l.b16 %v1032
    %v1072 = vunpack.c.l.b16 %v1033
    %v1073 = vunpack.c.l.b16 %v1034
    %v1074 = vunpack.c.l.b16 %v1035
    %v1075 = vunpack.c.l.b16 %v1036
    %v1076 = vunpack.c.l.b16 %v1037
    %v1077 = vunpack.c.l.b16 %v1038
    %v1078 = vunpack.c.l.b16 %v1039
    %v1079 = vunpack.c.l.b16 %v1040
    %v1080 = vunpack.c.l.b16 %v1041
    %v1081 = vpack.c.b16 %v1066, %v1065
    %v1082 = vpack.c.b16 %v1068, %v1067
    %v1083 = vpack.c.b16 %v1070, %v1069
    %v1084 = vpack.c.b16 %v1072, %v1071
    %v1085 = vpack.c.b16 %v1074, %v1073
    %v1086 = vpack.c.b16 %v1076, %v1075
    %v1087 = vpack.c.b16 %v1078, %v1077
    %v1088 = vpack.c.b16 %v1080, %v1079
    %1097 = vmatprep.subr.bf16.mxu0 0
    %1098 = vmatpush1.bf16.msra.mxu0 %v1081
    %1099 = vmatprep.subr.bf16.mxu0 0
    %1100 = vmatpush1.bf16.msra.mxu0 %v1082
    %1101 = vmatprep.subr.bf16.mxu0 0
    %1102 = vmatpush1.bf16.msra.mxu0 %v1083
    %1103 = vmatprep.subr.bf16.mxu0 0
    %1104 = vmatpush1.bf16.msra.mxu0 %v1084
    %1105 = vmatprep.subr.bf16.mxu0 0
    %1106 = vmatpush1.bf16.msra.mxu0 %v1085
    %1107 = vmatprep.subr.bf16.mxu0 0
    %1108 = vmatpush1.bf16.msra.mxu0 %v1086
    %1109 = vmatprep.subr.bf16.mxu0 0
    %1110 = vmatpush1.bf16.msra.mxu0 %v1087
    %1111 = vmatprep.subr.bf16.mxu0 0
    %1112 = vmatpush1.bf16.msra.mxu0 %v1088
    %1113 = vmatprep.subr.bf16.mxu0 0
    %1114 = vmatpush1.bf16.msra.mxu0 0
    %1115 = vmatprep.subr.bf16.mxu0 0
    %1116 = vmatpush1.bf16.msra.mxu0 0
    %1117 = vmatprep.subr.bf16.mxu0 0
    %1118 = vmatpush1.bf16.msra.mxu0 0
    %1119 = vmatprep.subr.bf16.mxu0 0
    %1120 = vmatpush1.bf16.msra.mxu0 0
    %1121 = vmatprep.subr.bf16.mxu0 0
    %1122 = vmatpush1.bf16.msra.mxu0 0
    %1123 = vmatprep.subr.bf16.mxu0 0
    %1124 = vmatpush1.bf16.msra.mxu0 0
    %1125 = vmatprep.subr.bf16.mxu0 0
    %1126 = vmatpush1.bf16.msra.mxu0 0
    %1127 = vmatprep.subr.bf16.mxu0 0
    %1128 = vmatpush1.bf16.msra.mxu0 0
    %1129 = vmatprep.mubr.bf16.mxu0 0
    %1130 = vmatmul.mubr.bf16.gmra.mrb[0].mxu0 %v1018
    %v1131 = vpop.f32.mrb[0].mxu0
    %v1132 = vadd.f32 %v1047, %v1131
    %v1133 = vpop.f32.mrb[0].mxu0
    %v1134 = vpop.f32.mrb[0].mxu0
    %v1135 = vadd.f32 %v1047, %v1134
    %v1136 = vpop.f32.mrb[0].mxu0
    %1137 = vmatprep.mubr.bf16.mxu0 0
    %1138 = vmatmul.mubr.bf16.gmra.mrb[0].mxu0 %v1019
    %v1139 = vpop.f32.mrb[0].mxu0
    %v1140 = vadd.f32 %v1047, %v1139
    %v1141 = vpop.f32.mrb[0].mxu0
    %v1142 = vpop.f32.mrb[0].mxu0
    %v1143 = vadd.f32 %v1047, %v1142
    %v1144 = vpop.f32.mrb[0].mxu0
    %1145 = vmatprep.mubr.bf16.mxu0 0
    %1146 = vmatmul.mubr.bf16.gmra.mrb[0].mxu0 %v1020
    %v1147 = vpop.f32.mrb[0].mxu0
    %v1148 = vadd.f32 %v1047, %v1147
    %v1149 = vpop.f32.mrb[0].mxu0
    %v1150 = vpop.f32.mrb[0].mxu0
    %v1151 = vadd.f32 %v1047, %v1150
    %v1152 = vpop.f32.mrb[0].mxu0
    %1153 = vmatprep.mubr.bf16.mxu0 0
    %1154 = vmatmul.mubr.bf16.gmra.mrb[0].mxu0 %v1021
    %v1155 = vpop.f32.mrb[0].mxu0
    %v1156 = vadd.f32 %v1047, %v1155
    %v1157 = vpop.f32.mrb[0].mxu0
    %v1158 = vpop.f32.mrb[0].mxu0
    %v1159 = vadd.f32 %v1047, %v1158
    %v1160 = vpop.f32.mrb[0].mxu0
    %1161 = vmatprep.mubr.bf16.mxu0 0
    %1162 = vmatmul.mubr.bf16.gmra.mrb[0].mxu0 %v1022
    %v1163 = vpop.f32.mrb[0].mxu0
    %v1164 = vadd.f32 %v1047, %v1163
    %v1165 = vpop.f32.mrb[0].mxu0
    %v1166 = vpop.f32.mrb[0].mxu0
    %v1167 = vadd.f32 %v1047, %v1166
    %v1168 = vpop.f32.mrb[0].mxu0
    %1169 = vmatprep.mubr.bf16.mxu0 0
    %1170 = vmatmul.mubr.bf16.gmra.mrb[0].mxu0 %v1023
    %v1171 = vpop.f32.mrb[0].mxu0
    %v1172 = vadd.f32 %v1047, %v1171
    %v1173 = vpop.f32.mrb[0].mxu0
    %v1174 = vpop.f32.mrb[0].mxu0
    %v1175 = vadd.f32 %v1047, %v1174
    %v1176 = vpop.f32.mrb[0].mxu0
    %1177 = vmatprep.mubr.bf16.mxu0 0
    %1178 = vmatmul.mubr.bf16.gmra.mrb[0].mxu0 %v1024
    %v1179 = vpop.f32.mrb[0].mxu0
    %v1180 = vadd.f32 %v1047, %v1179
    %v1181 = vpop.f32.mrb[0].mxu0
    %v1182 = vpop.f32.mrb[0].mxu0
    %v1183 = vadd.f32 %v1047, %v1182
    %v1184 = vpop.f32.mrb[0].mxu0
    %1185 = vmatprep.mubr.bf16.mxu0 0
    %1186 = vmatmul.mubr.bf16.gmra.mrb[0].mxu0 %v1025
    %v1187 = vpop.f32.mrb[0].mxu0
    %v1188 = vadd.f32 %v1047, %v1187
    %v1189 = vpop.f32.mrb[0].mxu0
    %v1190 = vpop.f32.mrb[0].mxu0
    %v1191 = vadd.f32 %v1047, %v1190
    %v1192 = vpop.f32.mrb[0].mxu0
    %1193 = vdwg.mxu0
    %1194 = vst [vmem:[#allocation2] sm:$0xff] %v1132
    %1195 = vst [vmem:[#allocation2 + $0x8] sm:$0xff] %v1135
    %1196 = vst [vmem:[#allocation2 + $0x10] sm:$0xff] %v1140
    %1197 = vst [vmem:[#allocation2 + $0x18] sm:$0xff] %v1143
    %1198 = vst [vmem:[#allocation2 + $0x20] sm:$0xff] %v1148
    %1199 = vst [vmem:[#allocation2 + $0x28] sm:$0xff] %v1151
    %1200 = vst [vmem:[#allocation2 + $0x30] sm:$0xff] %v1156
    %1201 = vst [vmem:[#allocation2 + $0x38] sm:$0xff] %v1159
    %1202 = vst [vmem:[#allocation2 + $0x40] sm:$0xff] %v1164
    %1203 = vst [vmem:[#allocation2 + $0x48] sm:$0xff] %v1167
    %1204 = vst [vmem:[#allocation2 + $0x50] sm:$0xff] %v1172
    %1205 = vst [vmem:[#allocation2 + $0x58] sm:$0xff] %v1175
    %1206 = vst [vmem:[#allocation2 + $0x60] sm:$0xff] %v1180
    %1207 = vst [vmem:[#allocation2 + $0x68] sm:$0xff] %v1183
    %1208 = vst [vmem:[#allocation2 + $0x70] sm:$0xff] %v1188
    %1209 = vst [vmem:[#allocation2 + $0x78] sm:$0xff] %v1191
    // Predicated region
    $region22: #{tpu_custom_call.1} parent=1 // pred_check
      _
    $region23: #{tpu_custom_call.1} parent=1 // pred_check_branch
      %1211 = sbr.rel (0) target = $region25
    $region24: #{tpu_custom_call.1} parent=1 // pred_region
      %s1213 = ssub.s32 2048, 2048
      %1214 = vsyncadd [#allocation3], %s1213
      %s1215 = sshll.u32 [#allocation2], 4
      %s1216 = int_to_ptr.vmem [resolvable:$true] %s1215
      %1221 = dma.vmem_to_hbm [thread:$0]  %s1216, 2048, %s5, [#allocation3], 128, 128, 8
    $region25: #{tpu_custom_call.1} parent=1 // pred_fallthru
      _
    // Predicated region
    $region26: #{tpu_custom_call.1} parent=1 // pred_check
      _
    $region27: #{tpu_custom_call.1} parent=1 // pred_check_branch
      %1223 = sbr.rel (0) target = $region29
    $region28: #{tpu_custom_call.1} parent=1 // pred_region
      %1224 = dma.done [#allocation3], 2048
    $region29: #{tpu_custom_call.1} parent=1 // pred_fallthru
      _
    %1225 = vsyncpa [#allocation3], 1

</llo_original>
